<compile_context>
chip_gen: v5e
topology: v5e:2x2
jax: 0.10.0
libtpu: 0.0.40
codegen_flags: <defaults>
</compile_context>

<pallas_src>
import functools

import jax
import jax.numpy as jnp
from jax import lax
from jax.experimental import pallas as pl
from jax.experimental.pallas import tpu as pltpu


def _sepconv_kernel(x_ref, wdw_ref, wpw_ref, o_ref, *,
                    kh_size, kw_size, stride, dilation,
                    th, w_out, c_in):
    """One (batch, output-row-block) grid step.

    x_ref  : (1, s*s, Hq, Wq*C_in)         stride-phase packed, zero-padded input
    wdw_ref: (KH*KW, W_out*C_in)           depthwise taps, tiled across (W, C_in) lanes
    wpw_ref: (W_out*C_in, W_out*C_out_pad) block-diagonal pointwise matrix (lane-padded)
    o_ref  : (1, TH, W_out*C_out_pad)      lane-dense flattened output row block
    """
    r0 = pl.multiple_of(pl.program_id(1) * th, th)
    w_lanes = w_out * c_in

    wdw = wdw_ref[...].astype(jnp.float32)          # (KH*KW, W_out*C_in)

    # ---- depthwise: static unroll over taps; contiguous slices straight from the ref
    acc = None
    for kh in range(kh_size):
        qh, ph = divmod(kh * dilation, stride)      # static H phase decomposition
        for kw in range(kw_size):
            qw, pw = divmod(kw * dilation, stride)  # static W phase decomposition
            patch = x_ref[0, ph * stride + pw,
                          pl.ds(r0 + qh, th),
                          pl.ds(qw * c_in, w_lanes)].astype(jnp.float32)
            tap = kh * kw_size + kw
            term = patch * wdw[tap:tap + 1]         # (TH, W_out*C_in) VPU FMA
            acc = term if acc is None else acc + term

    # ---- pointwise 1x1 on the MXU: block-diagonal matmul lands directly in the
    #      lane-dense (TH, W_out*C_out_pad) store layout (no reshapes / lane extracts)
    out = jnp.dot(acc, wpw_ref[...].astype(jnp.float32),
                  preferred_element_type=jnp.float32)
    o_ref[0] = out.astype(o_ref.dtype)


def separable_conv2d(x_nchw, w_dw, w_pw, *, stride=1, padding=0, dilation=1):
    """x_nchw: (N, Cin, H, W); w_dw: (Cin, 1, KH, KW); w_pw: (Cout, Cin, 1, 1)."""
    n, c_in, h, w = (int(d) for d in x_nchw.shape)
    kh_size, kw_size = int(w_dw.shape[2]), int(w_dw.shape[3])
    c_out = int(w_pw.shape[0])
    s = int(stride)

    h_out = (h + 2 * padding - dilation * (kh_size - 1) - 1) // s + 1
    w_out = (w + 2 * padding - dilation * (kw_size - 1) - 1) // s + 1

    # ---- output-row tiling: multiple of 8, capped by a vreg/VMEM-friendly budget ----
    lane_bytes = w_out * max(c_in, c_out) * 4
    th_cap = max(8, min(256, ((512 * 1024) // max(lane_bytes, 1)) // 8 * 8))
    th = min(th_cap, -(-h_out // 8) * 8)            # small h_out -> one step per batch
    h_out_pad = -(-h_out // th) * th                # row-padded output, sliced later
    n_rb = h_out_pad // th

    # ---- stride-phase repack (plain JAX; fuses into one repacked HBM array) ----
    hp, wp = h + 2 * padding, w + 2 * padding
    max_qh = ((kh_size - 1) * dilation) // s
    max_qw = ((kw_size - 1) * dilation) // s
    hq = max(-(-hp // s), h_out_pad + max_qh)       # enough rows for every tap slice
    wq = max(-(-wp // s), w_out + max_qw)           # enough cols for every tap slice
    assert hq >= h_out_pad + max_qh and wq >= w_out + max_qw

    x_nhwc = jnp.transpose(x_nchw, (0, 2, 3, 1))
    x_pad = jnp.pad(
        x_nhwc,
        ((0, 0),
         (padding, hq * s - h - padding),
         (padding, wq * s - w - padding),
         (0, 0)))
    # stride-phase decomposition of H and W + lane flatten of (W, C_in)
    x_packed = (x_pad.reshape(n, hq, s, wq, s, c_in)
                      .transpose(0, 2, 4, 1, 3, 5)
                      .reshape(n, s * s, hq, wq * c_in))

    # depthwise taps tiled across the flattened (W_out, C_in) lane axis
    wdw_taps = jnp.transpose(w_dw[:, 0, :, :], (1, 2, 0)).reshape(kh_size * kw_size, c_in)
    wdw_flat = jnp.tile(wdw_taps, (1, w_out)).astype(jnp.float32)     # (KH*KW, W_out*C_in)

    # pointwise 1x1 as a block-diagonal matrix: W_out copies of the (C_in, C_out)
    # matrix on the diagonal -> one MXU matmul producing the flattened output layout.
    wpw_mat = jnp.transpose(w_pw[:, :, 0, 0], (1, 0)).astype(jnp.float32)   # (C_in, C_out)
    wpw_bd = jnp.kron(jnp.eye(w_out, dtype=jnp.float32), wpw_mat)  # (W_out*C_in, W_out*C_out)

    out_lanes = w_out * c_out
    out_lanes_pad = -(-out_lanes // 128) * 128      # keep stores unmasked / 128-lane
    if out_lanes_pad != out_lanes:
        wpw_bd = jnp.pad(wpw_bd, ((0, 0), (0, out_lanes_pad - out_lanes)))

    kernel = functools.partial(
        _sepconv_kernel,
        kh_size=kh_size, kw_size=kw_size,
        stride=s, dilation=dilation,
        th=th, w_out=w_out, c_in=c_in,
    )

    # VMEM budget: double-buffered packed image + output block + weights + headroom.
    in_blk = s * s * hq * wq * c_in * 4
    out_blk = th * out_lanes_pad * 4
    w_blk = kh_size * kw_size * w_out * c_in * 4 + (w_out * c_in) * out_lanes_pad * 4
    vmem_limit = int(min(max(32 << 20, 2 * (in_blk + out_blk + w_blk) + (8 << 20)),
                         96 << 20))

    out_flat = pl.pallas_call(
        kernel,
        out_shape=jax.ShapeDtypeStruct((n, h_out_pad, out_lanes_pad), x_nchw.dtype),
        grid_spec=pltpu.PrefetchScalarGridSpec(
            num_scalar_prefetch=0,
            grid=(n, n_rb),
            in_specs=[
                # full packed image per batch; constant block index across the row
                # axis -> DMA'd once per batch and reused by every row block.
                pl.BlockSpec((1, s * s, hq, wq * c_in), lambda b, r: (b, 0, 0, 0)),
                pl.BlockSpec((kh_size * kw_size, w_out * c_in), lambda b, r: (0, 0)),
                pl.BlockSpec((w_out * c_in, out_lanes_pad), lambda b, r: (0, 0)),
            ],
            out_specs=pl.BlockSpec((1, th, out_lanes_pad), lambda b, r: (b, r, 0)),
        ),
        compiler_params=pltpu.CompilerParams(
            dimension_semantics=("parallel", "arbitrary"),
            vmem_limit_bytes=vmem_limit),
    )(x_packed, wdw_flat, wpw_bd)

    out_nhwc = out_flat[:, :h_out, :out_lanes].reshape(n, h_out, w_out, c_out)
    return jnp.transpose(out_nhwc, (0, 3, 1, 2))    # back to NCHW


def _reference(x_nchw, w_dw, w_pw, *, stride, padding, dilation):
    """Pure-JAX reference matching nn.Conv2d semantics (NCHW, bias=False)."""
    c_in = x_nchw.shape[1]
    dn = lax.conv_dimension_numbers(x_nchw.shape, w_dw.shape, ("NCHW", "OIHW", "NCHW"))
    y = lax.conv_general_dilated(
        x_nchw, w_dw, window_strides=(stride, stride),
        padding=((padding, padding), (padding, padding)),
        rhs_dilation=(dilation, dilation),
        dimension_numbers=dn, feature_group_count=c_in)
    y = lax.conv_general_dilated(
        y, w_pw, window_strides=(1, 1), padding=((0, 0), (0, 0)),
        dimension_numbers=dn, feature_group_count=1)
    return y


if __name__ == "__main__":
    key = jax.random.PRNGKey(0)
    k1, k2, k3 = jax.random.split(key, 3)

    # SeparableConv2d(in_channels=4, out_channels=8, kernel_size=3, stride=1,
    #                 padding=1, dilation=1, bias=False)
    N, C_IN, H, W = 2, 4, 16, 16
    C_OUT, K = 8, 3

    x = jax.random.normal(k1, (N, C_IN, H, W), dtype=jnp.float32)
    w_dw = jax.random.normal(k2, (C_IN, 1, K, K), dtype=jnp.float32) * 0.1
    w_pw = jax.random.normal(k3, (C_OUT, C_IN, 1, 1), dtype=jnp.float32) * 0.1

    # primary config: stride=1, padding=1, dilation=1
    out = separable_conv2d(x, w_dw, w_pw, stride=1, padding=1, dilation=1)
    out = jax.block_until_ready(out)
    ref = _reference(x, w_dw, w_pw, stride=1, padding=1, dilation=1)
    assert out.shape == ref.shape, (out.shape, ref.shape)
    assert jnp.allclose(out, ref, atol=1e-4, rtol=1e-4), "mismatch vs reference (s=1)"

    # also exercise the stride-phase path with stride=2 (as used by strided blocks)
    out2 = separable_conv2d(x, w_dw, w_pw, stride=2, padding=1, dilation=1)
    out2 = jax.block_until_ready(out2)
    ref2 = _reference(x, w_dw, w_pw, stride=2, padding=1, dilation=1)
    assert out2.shape == ref2.shape, (out2.shape, ref2.shape)
    assert jnp.allclose(out2, ref2, atol=1e-4, rtol=1e-4), "mismatch vs reference (s=2)"

    print("KERNEL_OK")
</pallas_src>

<mosaic_0001>
module attributes {stable_mosaic.version = 11 : i64} {
  func.func @_sepconv_kernel(%arg0: i32, %arg1: i32, %arg2: memref<1x1x18x72xf32, #tpu.memory_space<vmem>>, %arg3: memref<9x64xf32, #tpu.memory_space<vmem>>, %arg4: memref<64x128xf32, #tpu.memory_space<vmem>>, %arg5: memref<1x16x128xf32, #tpu.memory_space<vmem>>) attributes {dimension_semantics = [#tpu.dimension_semantics<parallel>, #tpu.dimension_semantics<arbitrary>], iteration_bounds = array<i64: 2, 1>, scalar_prefetch = 0 : i64, scratch_operands = 0 : i64, tpu.core_type = #tpu.core_type<tc>, window_params = [{transform_indices = @transform_0, window_bounds = array<i64: 1, 1, 18, 72>}, {pipeline_mode = #tpu.pipeline_mode<synchronous>, transform_indices = @transform_1, window_bounds = array<i64: 9, 64>}, {pipeline_mode = #tpu.pipeline_mode<synchronous>, transform_indices = @transform_2, window_bounds = array<i64: 64, 128>}, {transform_indices = @transform_3, window_bounds = array<i64: 1, 16, 128>}]} {
    %c16_i32 = arith.constant 16 : i32
    %0 = arith.muli %arg1, %c16_i32 : i32
    %1 = tpu.assume_multiple %0, 16 : i32
    %c0 = arith.constant 0 : index
    %c0_0 = arith.constant 0 : index
    %2 = vector.load %arg3[%c0, %c0_0] : memref<9x64xf32, #tpu.memory_space<vmem>>, vector<9x64xf32>
    %c0_i32 = arith.constant 0 : i32
    %3 = arith.addi %1, %c0_i32 : i32
    %c0_1 = arith.constant 0 : index
    %c0_2 = arith.constant 0 : index
    %4 = arith.index_cast %3 : i32 to index
    %c0_3 = arith.constant 0 : index
    %5 = vector.load %arg2[%c0_1, %c0_2, %4, %c0_3] : memref<1x1x18x72xf32, #tpu.memory_space<vmem>>, vector<1x1x16x64xf32>
    %6 = vector.shape_cast %5 : vector<1x1x16x64xf32> to vector<16x64xf32>
    %7 = vector.extract_strided_slice %2 {offsets = [0, 0], sizes = [1, 64], strides = [1, 1]} : vector<9x64xf32> to vector<1x64xf32>
    %8 = vector.broadcast %7 : vector<1x64xf32> to vector<16x64xf32>
    %9 = arith.mulf %6, %8 : vector<16x64xf32>
    %c0_i32_4 = arith.constant 0 : i32
    %10 = arith.addi %1, %c0_i32_4 : i32
    %c0_5 = arith.constant 0 : index
    %c0_6 = arith.constant 0 : index
    %11 = arith.index_cast %10 : i32 to index
    %c4 = arith.constant 4 : index
    %12 = vector.load %arg2[%c0_5, %c0_6, %11, %c4] : memref<1x1x18x72xf32, #tpu.memory_space<vmem>>, vector<1x1x16x64xf32>
    %13 = vector.shape_cast %12 : vector<1x1x16x64xf32> to vector<16x64xf32>
    %14 = vector.extract_strided_slice %2 {offsets = [1, 0], sizes = [1, 64], strides = [1, 1]} : vector<9x64xf32> to vector<1x64xf32>
    %15 = vector.broadcast %14 : vector<1x64xf32> to vector<16x64xf32>
    %16 = arith.mulf %13, %15 : vector<16x64xf32>
    %17 = arith.addf %9, %16 : vector<16x64xf32>
    %c0_i32_7 = arith.constant 0 : i32
    %18 = arith.addi %1, %c0_i32_7 : i32
    %c0_8 = arith.constant 0 : index
    %c0_9 = arith.constant 0 : index
    %19 = arith.index_cast %18 : i32 to index
    %c8 = arith.constant 8 : index
    %20 = vector.load %arg2[%c0_8, %c0_9, %19, %c8] : memref<1x1x18x72xf32, #tpu.memory_space<vmem>>, vector<1x1x16x64xf32>
    %21 = vector.shape_cast %20 : vector<1x1x16x64xf32> to vector<16x64xf32>
    %22 = vector.extract_strided_slice %2 {offsets = [2, 0], sizes = [1, 64], strides = [1, 1]} : vector<9x64xf32> to vector<1x64xf32>
    %23 = vector.broadcast %22 : vector<1x64xf32> to vector<16x64xf32>
    %24 = arith.mulf %21, %23 : vector<16x64xf32>
    %25 = arith.addf %17, %24 : vector<16x64xf32>
    %c1_i32 = arith.constant 1 : i32
    %26 = arith.addi %1, %c1_i32 : i32
    %c0_10 = arith.constant 0 : index
    %c0_11 = arith.constant 0 : index
    %27 = arith.index_cast %26 : i32 to index
    %c0_12 = arith.constant 0 : index
    %28 = vector.load %arg2[%c0_10, %c0_11, %27, %c0_12] : memref<1x1x18x72xf32, #tpu.memory_space<vmem>>, vector<1x1x16x64xf32>
    %29 = vector.shape_cast %28 : vector<1x1x16x64xf32> to vector<16x64xf32>
    %30 = vector.extract_strided_slice %2 {offsets = [3, 0], sizes = [1, 64], strides = [1, 1]} : vector<9x64xf32> to vector<1x64xf32>
    %31 = vector.broadcast %30 : vector<1x64xf32> to vector<16x64xf32>
    %32 = arith.mulf %29, %31 : vector<16x64xf32>
    %33 = arith.addf %25, %32 : vector<16x64xf32>
    %c1_i32_13 = arith.constant 1 : i32
    %34 = arith.addi %1, %c1_i32_13 : i32
    %c0_14 = arith.constant 0 : index
    %c0_15 = arith.constant 0 : index
    %35 = arith.index_cast %34 : i32 to index
    %c4_16 = arith.constant 4 : index
    %36 = vector.load %arg2[%c0_14, %c0_15, %35, %c4_16] : memref<1x1x18x72xf32, #tpu.memory_space<vmem>>, vector<1x1x16x64xf32>
    %37 = vector.shape_cast %36 : vector<1x1x16x64xf32> to vector<16x64xf32>
    %38 = vector.extract_strided_slice %2 {offsets = [4, 0], sizes = [1, 64], strides = [1, 1]} : vector<9x64xf32> to vector<1x64xf32>
    %39 = vector.broadcast %38 : vector<1x64xf32> to vector<16x64xf32>
    %40 = arith.mulf %37, %39 : vector<16x64xf32>
    %41 = arith.addf %33, %40 : vector<16x64xf32>
    %c1_i32_17 = arith.constant 1 : i32
    %42 = arith.addi %1, %c1_i32_17 : i32
    %c0_18 = arith.constant 0 : index
    %c0_19 = arith.constant 0 : index
    %43 = arith.index_cast %42 : i32 to index
    %c8_20 = arith.constant 8 : index
    %44 = vector.load %arg2[%c0_18, %c0_19, %43, %c8_20] : memref<1x1x18x72xf32, #tpu.memory_space<vmem>>, vector<1x1x16x64xf32>
    %45 = vector.shape_cast %44 : vector<1x1x16x64xf32> to vector<16x64xf32>
    %46 = vector.extract_strided_slice %2 {offsets = [5, 0], sizes = [1, 64], strides = [1, 1]} : vector<9x64xf32> to vector<1x64xf32>
    %47 = vector.broadcast %46 : vector<1x64xf32> to vector<16x64xf32>
    %48 = arith.mulf %45, %47 : vector<16x64xf32>
    %49 = arith.addf %41, %48 : vector<16x64xf32>
    %c2_i32 = arith.constant 2 : i32
    %50 = arith.addi %1, %c2_i32 : i32
    %c0_21 = arith.constant 0 : index
    %c0_22 = arith.constant 0 : index
    %51 = arith.index_cast %50 : i32 to index
    %c0_23 = arith.constant 0 : index
    %52 = vector.load %arg2[%c0_21, %c0_22, %51, %c0_23] : memref<1x1x18x72xf32, #tpu.memory_space<vmem>>, vector<1x1x16x64xf32>
    %53 = vector.shape_cast %52 : vector<1x1x16x64xf32> to vector<16x64xf32>
    %54 = vector.extract_strided_slice %2 {offsets = [6, 0], sizes = [1, 64], strides = [1, 1]} : vector<9x64xf32> to vector<1x64xf32>
    %55 = vector.broadcast %54 : vector<1x64xf32> to vector<16x64xf32>
    %56 = arith.mulf %53, %55 : vector<16x64xf32>
    %57 = arith.addf %49, %56 : vector<16x64xf32>
    %c2_i32_24 = arith.constant 2 : i32
    %58 = arith.addi %1, %c2_i32_24 : i32
    %c0_25 = arith.constant 0 : index
    %c0_26 = arith.constant 0 : index
    %59 = arith.index_cast %58 : i32 to index
    %c4_27 = arith.constant 4 : index
    %60 = vector.load %arg2[%c0_25, %c0_26, %59, %c4_27] : memref<1x1x18x72xf32, #tpu.memory_space<vmem>>, vector<1x1x16x64xf32>
    %61 = vector.shape_cast %60 : vector<1x1x16x64xf32> to vector<16x64xf32>
    %62 = vector.extract_strided_slice %2 {offsets = [7, 0], sizes = [1, 64], strides = [1, 1]} : vector<9x64xf32> to vector<1x64xf32>
    %63 = vector.broadcast %62 : vector<1x64xf32> to vector<16x64xf32>
    %64 = arith.mulf %61, %63 : vector<16x64xf32>
    %65 = arith.addf %57, %64 : vector<16x64xf32>
    %c2_i32_28 = arith.constant 2 : i32
    %66 = arith.addi %1, %c2_i32_28 : i32
    %c0_29 = arith.constant 0 : index
    %c0_30 = arith.constant 0 : index
    %67 = arith.index_cast %66 : i32 to index
    %c8_31 = arith.constant 8 : index
    %68 = vector.load %arg2[%c0_29, %c0_30, %67, %c8_31] : memref<1x1x18x72xf32, #tpu.memory_space<vmem>>, vector<1x1x16x64xf32>
    %69 = vector.shape_cast %68 : vector<1x1x16x64xf32> to vector<16x64xf32>
    %70 = vector.extract_strided_slice %2 {offsets = [8, 0], sizes = [1, 64], strides = [1, 1]} : vector<9x64xf32> to vector<1x64xf32>
    %71 = vector.broadcast %70 : vector<1x64xf32> to vector<16x64xf32>
    %72 = arith.mulf %69, %71 : vector<16x64xf32>
    %73 = arith.addf %65, %72 : vector<16x64xf32>
    %c0_32 = arith.constant 0 : index
    %c0_33 = arith.constant 0 : index
    %74 = vector.load %arg4[%c0_32, %c0_33] : memref<64x128xf32, #tpu.memory_space<vmem>>, vector<64x128xf32>
    %cst = arith.constant dense<0.000000e+00> : vector<16x128xf32>
    %75 = tpu.matmul %73, %74, %cst {dimension_numbers = #tpu.dot_dimension_numbers<[1], [0], [0], [1], [0, 0, 1, 1], [], []>} : vector<16x64xf32>, vector<64x128xf32>, vector<16x128xf32> -> vector<16x128xf32>
    %c0_34 = arith.constant 0 : index
    %c0_35 = arith.constant 0 : index
    %c0_36 = arith.constant 0 : index
    %76 = vector.load %arg5[%c0_34, %c0_35, %c0_36] : memref<1x16x128xf32, #tpu.memory_space<vmem>>, vector<1x16x128xf32>
    %77 = vector.shape_cast %76 : vector<1x16x128xf32> to vector<16x128xf32>
    %78 = vector.shape_cast %75 : vector<16x128xf32> to vector<1x16x128xf32>
    tpu.vector_store %arg5[%c0_34, %c0_35, %c0_36], %78 {strides = array<i32>} : memref<1x16x128xf32, #tpu.memory_space<vmem>>, vector<1x16x128xf32>,
    return
  }
  func.func @transform_0(%arg0: i32, %arg1: i32) -> (i32, i32, i32, i32) {
    %c0_i32 = arith.constant 0 : i32
    %c0_i32_0 = arith.constant 0 : i32
    %c0_i32_1 = arith.constant 0 : i32
    %c0_i32_2 = arith.constant 0 : i32
    return %arg0, %c0_i32, %c0_i32_0, %c0_i32_1 : i32, i32, i32, i32
  }
  func.func @transform_1(%arg0: i32, %arg1: i32) -> (i32, i32) {
    %c0_i32 = arith.constant 0 : i32
    %c0_i32_0 = arith.constant 0 : i32
    %c0_i32_1 = arith.constant 0 : i32
    return %c0_i32, %c0_i32_0 : i32, i32
  }
  func.func @transform_2(%arg0: i32, %arg1: i32) -> (i32, i32) {
    %c0_i32 = arith.constant 0 : i32
    %c0_i32_0 = arith.constant 0 : i32
    %c0_i32_1 = arith.constant 0 : i32
    return %c0_i32, %c0_i32_0 : i32, i32
  }
  func.func @transform_3(%arg0: i32, %arg1: i32) -> (i32, i32, i32) {
    %c0_i32 = arith.constant 0 : i32
    %c0_i32_0 = arith.constant 0 : i32
    return %arg0, %arg1, %c0_i32 : i32, i32, i32
  }
}

</mosaic_0001>

<llo_original>
// kernel: tpu_custom_call.1
$region0: #{tpu_custom_call.1}
  #allocation0 [shape = 'u32[]', space=smem, size = 0x4, offset = 0x4, fixed_abs, tag = 'smem constant byte address 0x4 - core index']
  #allocation1 [shape = 'u32[72,128]{1,0:T(1,128)}', space=vmem, size = 0x9000, scoped, tag = 'internal scratch']
  %s0 = inlined_call_operand.vmem [shape: f32[2,1,18,72], index: 0, kind: input, shape index: {}]
  %s1 = inlined_call_operand.vmem [shape: f32[9,64], index: 1, kind: input, shape index: {}]
  %s2 = inlined_call_operand.vmem [shape: f32[64,128], index: 2, kind: input, shape index: {}]
  %s3 = inlined_call_operand.hbm [shape: f32[2,16,128], index: 3, kind: output, shape index: {}]
  %s4 = sld [smem:[#allocation0]]
  $region45: #{tpu_custom_call.1} parent=0
    _
  %s6 = ssub.s32 1, %s4
  %s7 = scalar_select 0, %s6, %s4
  $region1: #{tpu_custom_call.1} parent=0
    #allocation2 [shape = 'u8[16384]{0}', space=vmem, size = 0x4000, scoped, tag = 'output window, operand 0']
    #allocation3 [shape = 's32[2]{0}', space=sflag, size = 0x8, scoped, tag = 'scoped memory for tpu_custom_call.1']
    %8 = vsyncpa [#allocation3], 0
    %s9 = scalar_lea.sflag [#allocation3], 1
    %10 = vsyncpa %s9, 0
    loop: start=0, step=1, limit=4
    $region2: #{tpu_custom_call.1} parent=1 // loop_pre_header
      _
    $region3: #{tpu_custom_call.1} parent=1 // loop_header
      %s12 = sphi 0, %s16
      %p13 = scmp.ge.s32.totalorder %s12, 4
      %s19 = sphi 0, %s31
      %s20 = sphi 0, %s27
      %s21 = sphi 0, %s19
      %s22 = sphi 0, %s20
      %s23 = sphi 0, %s21
      %s24 = sphi 0, %s22
      %s34 = sphi 0, %s36
      %s37 = sphi 0, %s34
      %s38 = sphi 0, %s37
      %s54 = sphi 0, %s38
      %s58 = sphi 0, %s58
      %s60 = sphi 0, %s58
      %s61 = sphi 0, %s60
      %s75 = sphi 0, %s61
      %s79 = sphi 0, %s79
      %s81 = sphi 0, %s79
      %s82 = sphi 0, %s81
      %s96 = sphi 0, %s82
      %s104 = sphi 0, %s106
      %s107 = sphi 0, %s104
      %s108 = sphi 0, %s107
      %s124 = sphi 0, %s108
    $region4: #{tpu_custom_call.1} parent=1 // loop_header_branch
      %15 = sbr.rel (%p13) target = $region8
    $region5: #{tpu_custom_call.1} parent=1 // loop_body
      %s17 = ssub.s32 %s12, 1
      %s18 = ssub.s32 %s12, 2
      %s25 = sadd.s32 1, %s20
      %p26 = scmp.ge.s32.totalorder %s25, 1
      %s27 = scalar_select %p26, 0, %s25
      %s28 = sadd.s32 1, %s19
      %s29 = scalar_select %p26, %s28, %s19
      %p30 = scmp.ge.s32.totalorder %s29, 2
      %s31 = scalar_select %p30, 0, %s29
      %s32 = ssub.s32 %s19, %s31
      %p33 = scmp.eq.s32.totalorder %s32, 0
      %s35 = sadd.s32 %s34, 1
      %s36 = scalar_select %p33, %s34, %s35
      %p39 = pneg %p33
      %p40 = scmp.eq.s32.totalorder %s12, 1
      %p41 = por %p39, %p40
      %p42 = scmp.ne.s32.totalorder %s34, %s37
      %p43 = scmp.eq.s32.totalorder %s12, 0
      %p44 = por %p42, %p43
      %p45 = scmp.ne.s32.totalorder %s34, %s37
      %p46 = scmp.eq.s32.totalorder %s17, 1
      %p47 = por %p45, %p46
      %p48 = scmp.ne.s32.totalorder %s37, %s38
      %p49 = scmp.eq.s32.totalorder %s17, 0
      %p50 = por %p48, %p49
      %p51 = scmp.ne.s32.totalorder %s37, %s38
      %p52 = scmp.eq.s32.totalorder %s18, 1
      %p53 = por %p51, %p52
      %p55 = scmp.ne.s32.totalorder %s38, %s54
      %p56 = scmp.eq.s32.totalorder %s18, 0
      %p57 = por %p55, %p56
      %s59 = sadd.s32 %s58, 1
      %p62 = scmp.eq.s32.totalorder %s12, 1
      %p63 = scmp.ne.s32.totalorder %s58, %s60
      %p64 = scmp.eq.s32.totalorder %s12, 0
      %p65 = por %p63, %p64
      %p66 = scmp.ne.s32.totalorder %s58, %s60
      %p67 = scmp.eq.s32.totalorder %s17, 1
      %p68 = por %p66, %p67
      %p69 = scmp.ne.s32.totalorder %s60, %s61
      %p70 = scmp.eq.s32.totalorder %s17, 0
      %p71 = por %p69, %p70
      %p72 = scmp.ne.s32.totalorder %s60, %s61
      %p73 = scmp.eq.s32.totalorder %s18, 1
      %p74 = por %p72, %p73
      %p76 = scmp.ne.s32.totalorder %s61, %s75
      %p77 = scmp.eq.s32.totalorder %s18, 0
      %p78 = por %p76, %p77
      %s80 = sadd.s32 %s79, 1
      %p83 = scmp.eq.s32.totalorder %s12, 1
      %p84 = scmp.ne.s32.totalorder %s79, %s81
      %p85 = scmp.eq.s32.totalorder %s12, 0
      %p86 = por %p84, %p85
      %p87 = scmp.ne.s32.totalorder %s79, %s81
      %p88 = scmp.eq.s32.totalorder %s17, 1
      %p89 = por %p87, %p88
      %p90 = scmp.ne.s32.totalorder %s81, %s82
      %p91 = scmp.eq.s32.totalorder %s17, 0
      %p92 = por %p90, %p91
      %p93 = scmp.ne.s32.totalorder %s81, %s82
      %p94 = scmp.eq.s32.totalorder %s18, 1
      %p95 = por %p93, %p94
      %p97 = scmp.ne.s32.totalorder %s82, %s96
      %p98 = scmp.eq.s32.totalorder %s18, 0
      %p99 = por %p97, %p98
      %s100 = ssub.s32 %s19, %s31
      %s101 = ssub.s32 %s20, %s27
      %s102 = sor.u32 %s100, %s101
      %p103 = scmp.eq.s32.totalorder %s102, 0
      %s105 = sadd.s32 %s104, 1
      %s106 = scalar_select %p103, %s104, %s105
      %p109 = pneg %p103
      %p110 = scmp.eq.s32.totalorder %s12, 1
      %p111 = por %p109, %p110
      %p112 = scmp.ne.s32.totalorder %s104, %s107
      %p113 = scmp.eq.s32.totalorder %s12, 0
      %p114 = por %p112, %p113
      %p115 = scmp.ne.s32.totalorder %s104, %s107
      %p116 = scmp.eq.s32.totalorder %s17, 1
      %p117 = por %p115, %p116
      %p118 = scmp.ne.s32.totalorder %s107, %s108
      %p119 = scmp.eq.s32.totalorder %s17, 0
      %p120 = por %p118, %p119
      %p121 = scmp.ne.s32.totalorder %s107, %s108
      %p122 = scmp.eq.s32.totalorder %s18, 1
      %p123 = por %p121, %p122
      %p125 = scmp.ne.s32.totalorder %s108, %s124
      %p126 = scmp.eq.s32.totalorder %s18, 0
      %p127 = por %p125, %p126
      %p128 = scmp.le.s32.totalorder 1, %s12
      %p129 = scmp.lt.s32.totalorder %s12, 3
      %p130 = pnand %p128, %p129
      %p131 = pneg %p130
      // Predicated region
      $region9: #{tpu_custom_call.1} parent=5 // pred_check
        _
      $region10: #{tpu_custom_call.1} parent=5 // pred_check_branch
        %133 = sbr.rel (%p130) target = $region12
      $region11: #{tpu_custom_call.1} parent=5 // pred_region
        %s134 = ssub.s32 %s12, 1
        // Predicated region
        $region13: #{tpu_custom_call.1} parent=11 // pred_check
          %p135 = pneg %p71
        $region14: #{tpu_custom_call.1} parent=11 // pred_check_branch
          %137 = sbr.rel (%p135) target = $region16
        $region15: #{tpu_custom_call.1} parent=11 // pred_region
          _
        $region16: #{tpu_custom_call.1} parent=11 // pred_fallthru
          _
        // Predicated region
        $region17: #{tpu_custom_call.1} parent=11 // pred_check
          %p138 = pneg %p92
        $region18: #{tpu_custom_call.1} parent=11 // pred_check_branch
          %140 = sbr.rel (%p138) target = $region20
        $region19: #{tpu_custom_call.1} parent=11 // pred_region
          _
        $region20: #{tpu_custom_call.1} parent=11 // pred_fallthru
          _
      $region12: #{tpu_custom_call.1} parent=5 // pred_fallthru
        _
      %p141 = scmp.lt.s32.totalorder %s12, 2
      // Predicated region
      $region21: #{tpu_custom_call.1} parent=5 // pred_check
        %p142 = pneg %p141
      $region22: #{tpu_custom_call.1} parent=5 // pred_check_branch
        %144 = sbr.rel (%p142) target = $region24
      $region23: #{tpu_custom_call.1} parent=5 // pred_region
        // Predicated region
        $region25: #{tpu_custom_call.1} parent=23 // pred_check
          %p145 = pneg %p44
        $region26: #{tpu_custom_call.1} parent=23 // pred_check_branch
          %147 = sbr.rel (%p145) target = $region28
        $region27: #{tpu_custom_call.1} parent=23 // pred_region
          %p148 = scmp.lt.s32.totalorder %s19, 1
          %s149 = scalar_select %p148, %s19, 1
          %s150 = smul.addr %s149, 3
          %s151 = smul.addr %s150, 8
          %s152 = scalar_lea.vmem %s0, %s151
        $region28: #{tpu_custom_call.1} parent=23 // pred_fallthru
          _
      $region24: #{tpu_custom_call.1} parent=5 // pred_fallthru
        _
      %p153 = scmp.le.s32.totalorder 1, %s12
      %p154 = scmp.lt.s32.totalorder %s12, 3
      %p155 = pnand %p153, %p154
      %p156 = pneg %p155
      // Predicated region
      $region29: #{tpu_custom_call.1} parent=5 // pred_check
        _
      $region30: #{tpu_custom_call.1} parent=5 // pred_check_branch
        %158 = sbr.rel (%p155) target = $region32
      $region31: #{tpu_custom_call.1} parent=5 // pred_region
        %s159 = ssub.s32 %s12, 1
        %p160 = scmp.lt.s32.totalorder %s21, 1
        %s161 = scalar_select %p160, %s21, 1
        %s162 = smul.addr %s161, 3
        %s163 = smul.addr %s162, 8
        %s164 = scalar_lea.vmem %s0, %s163
        %p165 = pneg %p50
        %p166 = pneg %p47
        %p167 = pneg %p71
        %p168 = pneg %p68
        %p169 = pneg %p92
        %p170 = pneg %p89
        %p171 = pneg %p120
        %p172 = pneg %p117
        %s173 = sand.u32 %s107, 1
        %s174 = scalar_lea.sflag [#allocation3], %s173
        %s175 = sand.u32 %s107, 1
        %s176 = smul.addr %s175, 16
        %s177 = scalar_lea.vmem [#allocation2], %s176
        %p178 = scmp.lt.s32.totalorder %s21, 1
        %s179 = scalar_select %p178, %s21, 1
        %s180 = smul.addr %s179, 3
        %s181 = smul.addr %s180, 8
        %s182 = scalar_lea.vmem %s0, %s181
        %s183 = smul.u32 2, %s22
        %s184 = smul.u32 %s22, 16
        %v185 = vld [vmem:[%s1] sm:$0xff]
        %v186 = vld [vmem:[%s1 + $0x8] sm:$0x1]
        %s187 = scalar_lea.vmem %s182, %s184
        %v188 = vld [vmem:[%s187] sm:$0xff]
        %v189 = vld [vmem:[%s187 + $0x8] sm:$0xff]
        %v190 = vperm.slane %v185, 0
        %v191 = vmul.f32 %v188, %v190
        %v192 = vmul.f32 %v189, %v190
        %v193 = vperm.slane %v185, 1
        %195 = vrot.lane.b32.xlu0 %v193, 4
        %v196 = vpop.permute.xlu0 %195
        %v198 = vmul.f32 %v188, %v196
        %v199 = vmul.f32 %v189, %v196
        %202 = vrot.lane.b32.xlu0 %v198, 124
        %v203 = vpop.permute.xlu0 %202
        %204 = vrot.lane.b32.xlu0 %v199, 124
        %v205 = vpop.permute.xlu0 %204
        %v208 = vadd.f32 %v191, %v203
        %v209 = vadd.f32 %v192, %v205
        %v210 = vperm.slane %v185, 2
        %212 = vrot.lane.b32.xlu0 %v210, 8
        %v213 = vpop.permute.xlu0 %212
        %v215 = vmul.f32 %v188, %v213
        %v216 = vmul.f32 %v189, %v213
        %219 = vrot.lane.b32.xlu0 %v215, 120
        %v220 = vpop.permute.xlu0 %219
        %221 = vrot.lane.b32.xlu0 %v216, 120
        %v222 = vpop.permute.xlu0 %221
        %v225 = vadd.f32 %v208, %v220
        %v226 = vadd.f32 %v209, %v222
        %s227 = sadd.s32 %s184, 1
        %s228 = scalar_lea.vmem %s182, %s227
        %v229 = vld [vmem:[%s228] sm:$0xff]
        %v230 = vld [vmem:[%s228 + $0x8] sm:$0xff]
        %v231 = vperm.slane %v185, 3
        %v232 = vmul.f32 %v229, %v231
        %v233 = vmul.f32 %v230, %v231
        %v234 = vadd.f32 %v225, %v232
        %v235 = vadd.f32 %v226, %v233
        %v236 = vperm.slane %v185, 4
        %238 = vrot.lane.b32.xlu0 %v236, 4
        %v239 = vpop.permute.xlu0 %238
        %v241 = vmul.f32 %v229, %v239
        %v242 = vmul.f32 %v230, %v239
        %245 = vrot.lane.b32.xlu0 %v241, 124
        %v246 = vpop.permute.xlu0 %245
        %247 = vrot.lane.b32.xlu0 %v242, 124
        %v248 = vpop.permute.xlu0 %247
        %v251 = vadd.f32 %v234, %v246
        %v252 = vadd.f32 %v235, %v248
        %v253 = vperm.slane %v185, 5
        %255 = vrot.lane.b32.xlu0 %v253, 8
        %v256 = vpop.permute.xlu0 %255
        %v258 = vmul.f32 %v229, %v256
        %v259 = vmul.f32 %v230, %v256
        %262 = vrot.lane.b32.xlu0 %v258, 120
        %v263 = vpop.permute.xlu0 %262
        %264 = vrot.lane.b32.xlu0 %v259, 120
        %v265 = vpop.permute.xlu0 %264
        %v268 = vadd.f32 %v251, %v263
        %v269 = vadd.f32 %v252, %v265
        %s270 = sadd.s32 %s184, 2
        %s271 = scalar_lea.vmem %s182, %s270
        %v272 = vld [vmem:[%s271] sm:$0xff]
        %v273 = vld [vmem:[%s271 + $0x8] sm:$0xff]
        %v274 = vperm.slane %v185, 6
        %v275 = vmul.f32 %v272, %v274
        %v276 = vmul.f32 %v273, %v274
        %v277 = vadd.f32 %v268, %v275
        %v278 = vadd.f32 %v269, %v276
        %v279 = vperm.slane %v185, 7
        %281 = vrot.lane.b32.xlu0 %v279, 4
        %v282 = vpop.permute.xlu0 %281
        %v284 = vmul.f32 %v272, %v282
        %v285 = vmul.f32 %v273, %v282
        %288 = vrot.lane.b32.xlu0 %v284, 124
        %v289 = vpop.permute.xlu0 %288
        %290 = vrot.lane.b32.xlu0 %v285, 124
        %v291 = vpop.permute.xlu0 %290
        %v294 = vadd.f32 %v277, %v289
        %v295 = vadd.f32 %v278, %v291
        %v296 = vperm.slane %v186, 0
        %298 = vrot.lane.b32.xlu0 %v296, 8
        %v299 = vpop.permute.xlu0 %298
        %v301 = vmul.f32 %v272, %v299
        %v302 = vmul.f32 %v273, %v299
        %305 = vrot.lane.b32.xlu0 %v301, 120
        %v306 = vpop.permute.xlu0 %305
        %307 = vrot.lane.b32.xlu0 %v302, 120
        %v308 = vpop.permute.xlu0 %307
        %v311 = vadd.f32 %v294, %v306
        %v312 = vadd.f32 %v295, %v308
        %v313 = vld [vmem:[%s2] sm:$0xff]
        %v314 = vld [vmem:[%s2 + $0x8] sm:$0xff]
        %v315 = vld [vmem:[%s2 + $0x10] sm:$0xff]
        %v316 = vld [vmem:[%s2 + $0x18] sm:$0xff]
        %v317 = vld [vmem:[%s2 + $0x20] sm:$0xff]
        %v318 = vld [vmem:[%s2 + $0x28] sm:$0xff]
        %v319 = vld [vmem:[%s2 + $0x30] sm:$0xff]
        %v320 = vld [vmem:[%s2 + $0x38] sm:$0xff]
        %vm321 = vcmask 523264
        %v323 = vsel %vm321, %v311, 0
        %v326 = vsel %vm321, %v312, 0
        %328 = vmatpush.msra.mxu0 0.0
        %329 = vmatpush.msra.mxu0 0.0
        %330 = vmatpush.msra.mxu0 0.0
        %331 = vmatpush.msra.mxu0 0.0
        %332 = vmatpush.msra.mxu0 0.0
        %333 = vmatpush.msra.mxu0 0.0
        %334 = vmatpush.msra.mxu0 0.0
        %335 = vmatpush.msra.mxu0 0.0
        %336 = vmatpush.msra.mxu0 %v320
        %337 = vmatpush.msra.mxu0 %v319
        %338 = vmatpush.msra.mxu0 %v318
        %339 = vmatpush.msra.mxu0 %v317
        %340 = vmatpush.msra.mxu0 %v316
        %341 = vmatpush.msra.mxu0 %v315
        %342 = vmatpush.msra.mxu0 %v314
        %343 = vmatpush.msra.mxu0 %v313
        %344 = vmatmul.f32.gmra.mxu0 %v323
        %v345 = vpop.f32.mrf.mxu0
        %v346 = vadd.f32 0.0, %v345
        %347 = vmatmul.f32.gmra.mxu0 %v326
        %v348 = vpop.f32.mrf.mxu0
        %v349 = vadd.f32 0.0, %v348
        %350 = vdwg.mxu0
        %351 = vst [vmem:[%s177] sm:$0xff] %v346
        %352 = vst [vmem:[%s177 + $0x8] sm:$0xff] %v349
        %s353 = sand.u32 %s107, 1
        %s354 = scalar_lea.sflag [#allocation3], %s353
        %s355 = sand.u32 %s107, 1
        %s356 = smul.addr %s355, 16
        %s357 = scalar_lea.vmem [#allocation2], %s356
        // Predicated region
        $region33: #{tpu_custom_call.1} parent=31 // pred_check
          %p358 = pneg %p117
        $region34: #{tpu_custom_call.1} parent=31 // pred_check_branch
          %360 = sbr.rel (%p358) target = $region36
        $region35: #{tpu_custom_call.1} parent=31 // pred_region
          %s361 = smul.u32 2, %s22
          %363 = vsyncadd %s354, 0
          %s364 = smul.addr %s21, 2
          %s365 = sadd.s32 %s361, %s364
          %s366 = smul.addr %s365, 8
          %s367 = scalar_lea.hbm %s3, %s366
          %s368 = sshll.u32 %s357, 4
          %s369 = int_to_ptr.vmem [resolvable:$true] %s368
          %s370 = sshll.u32 %s367, 4
          %s371 = int_to_ptr.hbm [resolvable:$true] %s370
          %376 = dma.vmem_to_hbm [thread:$0]  %s369, 256, %s371, %s354, 128, 128, 8
        $region36: #{tpu_custom_call.1} parent=31 // pred_fallthru
          _
      $region32: #{tpu_custom_call.1} parent=5 // pred_fallthru
        _
      %p377 = scmp.le.s32.totalorder 2, %s12
      // Predicated region
      $region37: #{tpu_custom_call.1} parent=5 // pred_check
        %p378 = pneg %p377
      $region38: #{tpu_custom_call.1} parent=5 // pred_check_branch
        %380 = sbr.rel (%p378) target = $region40
      $region39: #{tpu_custom_call.1} parent=5 // pred_region
        %s381 = ssub.s32 %s12, 2
        // Predicated region
        $region41: #{tpu_custom_call.1} parent=39 // pred_check
          %p382 = pneg %p123
        $region42: #{tpu_custom_call.1} parent=39 // pred_check_branch
          %384 = sbr.rel (%p382) target = $region44
        $region43: #{tpu_custom_call.1} parent=39 // pred_region
          %s385 = sand.u32 %s108, 1
          %s386 = scalar_lea.sflag [#allocation3], %s385
          %s387 = sand.u32 %s108, 1
          %s388 = smul.addr %s387, 16
          %s389 = scalar_lea.vmem [#allocation2], %s388
          %391 = dma.done %s386, 256
        $region44: #{tpu_custom_call.1} parent=39 // pred_fallthru
          _
      $region40: #{tpu_custom_call.1} parent=5 // pred_fallthru
        _
    $region6: #{tpu_custom_call.1} parent=1 // loop_footer
      %s16 = sadd.s32 1, %s12
    $region7: #{tpu_custom_call.1} parent=1 // loop_footer_branch
      %11 = sbr.rel target = $region3
    $region8: #{tpu_custom_call.1} parent=1 // loop_exit
      _
    %392 = vsyncpa [#allocation3], 1
    %s393 = scalar_lea.sflag [#allocation3], 1
    %394 = vsyncpa %s393, 1

</llo_original>
